<compile_context>
chip_gen: v7x
topology: tpu7x:2x2x1
jax: 0.10.0
libtpu: 0.0.40
codegen_flags: <defaults>
</compile_context>

<pallas_src>
import functools

import jax
import jax.numpy as jnp
from jax.experimental import pallas as pl
from jax.experimental.pallas import tpu as pltpu

_LANES = 128
_TILE_ROWS_MAX = 2048          # (2048,128) f32 block = 1 MiB per input


def _round_up(x, m):
    return ((x + m - 1) // m) * m


def _huber_sum_kernel(pred_ref, gt_ref, out_ref, acc_ref, *,
                      tile_rows, steps_per_chunk, total_blocks,
                      num_full_blocks, rows_valid):
    """Accumulate SmoothL1 terms of one (tile_rows,128) tile.

    grid = (num_chunks [parallel], steps_per_chunk [arbitrary])
    out_ref : (8,128) per-chunk partial-sum block (written at finalize)
    acc_ref : (8,128) f32 VMEM scratch accumulator
    """
    c = pl.program_id(0)
    k = pl.program_id(1)

    @pl.when(k == 0)
    def _init():
        acc_ref[...] = jnp.zeros_like(acc_ref)

    gb = c * steps_per_chunk + k          # global block index (unclamped)

    def huber():
        d = pred_ref[...].astype(jnp.float32) - gt_ref[...].astype(jnp.float32)
        ad = jnp.abs(d)
        return jnp.where(ad < 1.0, 0.5 * d * d, ad - 0.5)

    def accumulate(h):
        # Fold (tile_rows,128) onto the (8,128) accumulator: pure VPU vreg
        # adds, no per-step cross-lane reduction.
        acc_ref[...] = acc_ref[...] + jnp.sum(
            h.reshape(tile_rows // 8, 8, _LANES), axis=0)

    # Fully-valid tiles: no masking cost.
    @pl.when(gb < num_full_blocks)
    def _full():
        accumulate(huber())

    # The (at most one) boundary tile: mask Pallas' padded garbage rows.
    @pl.when(jnp.logical_and(gb >= num_full_blocks, gb < total_blocks))
    def _partial():
        h = huber()
        rows = jax.lax.broadcasted_iota(jnp.int32, h.shape, 0) + gb * tile_rows
        accumulate(jnp.where(rows < rows_valid, h, 0.0))

    # gb >= total_blocks (clamped duplicate tiles on odd splits): skipped.

    @pl.when(k == steps_per_chunk - 1)
    def _finalize():
        out_ref[...] = acc_ref[...]


def boundary_regression_loss(loc, s_gt, e_gt, *, tile_rows_max=_TILE_ROWS_MAX,
                             max_chunks=2):
    """JAX/Pallas equivalent of BoundaryRegressionLoss.forward.

    Args:
      loc:  [B, 2] float — predicted (start, end)
      s_gt: [B]    float — ground-truth start
      e_gt: [B]    float — ground-truth end
    Returns:
      scalar float32 loss
    """
    B = loc.shape[0]
    if B == 0:
        return jnp.float32(float("nan"))   # torch mean over empty -> nan

    # Ship the narrow dtype when all inputs agree; cast to f32 in-kernel.
    same = (loc.dtype == s_gt.dtype) and (loc.dtype == e_gt.dtype)
    if same and loc.dtype.name in ("float32", "bfloat16"):
        wire_dtype = loc.dtype
    else:
        wire_dtype = jnp.float32

    n_valid = 2 * B                                   # elements in the stream
    r1 = _round_up(n_valid, _LANES) // _LANES         # min rows for (R,128)
    tile_rows = min(tile_rows_max, _round_up(r1, 16))  # multiple of 16
    rows = max(r1, tile_rows) if r1 < tile_rows else r1
    n_pad = rows * _LANES

    # pred: free reshape of loc (contiguous); pad only when alignment needs it.
    pred = loc.astype(wire_dtype).reshape(-1)         # [2B] interleaved s,e
    if n_pad != n_valid:
        pred = jnp.pad(pred, (0, n_pad - n_valid))
    pred = pred.reshape(rows, _LANES)

    # gt: single fused stack+pad+reshape pass producing the interleaved slab.
    gt = jnp.stack([s_gt.astype(wire_dtype), e_gt.astype(wire_dtype)],
                   axis=1).reshape(-1)                # [2B] interleaved s,e
    if n_pad != n_valid:
        gt = jnp.pad(gt, (0, n_pad - n_valid))
    gt = gt.reshape(rows, _LANES)

    total_blocks = -(-rows // tile_rows)
    num_full_blocks = rows // tile_rows
    num_chunks = max_chunks if total_blocks >= max_chunks else 1
    steps_per_chunk = -(-total_blocks // num_chunks)

    def in_index(c, k):
        gb = c * steps_per_chunk + k
        return (jnp.minimum(gb, total_blocks - 1), 0)   # keep DMA in-bounds

    kernel = functools.partial(
        _huber_sum_kernel,
        tile_rows=tile_rows,
        steps_per_chunk=steps_per_chunk,
        total_blocks=total_blocks,
        num_full_blocks=num_full_blocks,
        rows_valid=rows,
    )

    partials = pl.pallas_call(
        kernel,
        out_shape=jax.ShapeDtypeStruct((8 * num_chunks, _LANES), jnp.float32),
        grid=(num_chunks, steps_per_chunk),
        in_specs=[
            pl.BlockSpec((tile_rows, _LANES), in_index),
            pl.BlockSpec((tile_rows, _LANES), in_index),
        ],
        out_specs=pl.BlockSpec((8, _LANES), lambda c, k: (c, 0)),
        scratch_shapes=[pltpu.VMEM((8, _LANES), jnp.float32)],
        compiler_params=pltpu.CompilerParams(
            dimension_semantics=("parallel", "arbitrary"),
            vmem_limit_bytes=32 * 1024 * 1024,   # safe on v5e/v6e/v7x
        ),
    )(pred, gt)

    # Tiny final reduce over (8*num_chunks, 128) partials + fold in 1/B.
    return jnp.sum(partials) * jnp.float32(1.0 / B)


def _reference(loc, s_gt, e_gt):
    def smooth_l1(pred, target):
        d = pred.astype(jnp.float32) - target.astype(jnp.float32)
        ad = jnp.abs(d)
        return jnp.mean(jnp.where(ad < 1.0, 0.5 * d * d, ad - 0.5))

    return smooth_l1(loc[:, 0], s_gt) + smooth_l1(loc[:, 1], e_gt)


def boundary_regression_loss_auto(loc, s_gt, e_gt, *, min_batch_for_pallas=8192):
    """Dispatch: below a few thousand rows the fixed pallas_call launch cost
    exceeds the (tiny) HBM traffic, so the fused-XLA reference is optimal."""
    if loc.shape[0] < min_batch_for_pallas:
        return _reference(loc, s_gt, e_gt)
    return boundary_regression_loss(loc, s_gt, e_gt)


if __name__ == "__main__":
    key = jax.random.PRNGKey(0)

    # Small shape consistent with the module: B=8, loc=[B,2], gts=[B].
    B = 8
    k1, k2, k3 = jax.random.split(key, 3)
    # Scale loc so both huber branches (|d|<1 and |d|>=1) are exercised.
    loc = jax.random.uniform(k1, (B, 2), dtype=jnp.float32) * 3.0 - 1.0
    s_gt = jax.random.uniform(k2, (B,), dtype=jnp.float32)
    e_gt = jax.random.uniform(k3, (B,), dtype=jnp.float32)

    loss = jax.block_until_ready(boundary_regression_loss(loc, s_gt, e_gt))
    ref = _reference(loc, s_gt, e_gt)
    assert jnp.allclose(loss, ref, rtol=1e-5, atol=1e-6), (loss, ref)

    # Non-aligned batch: exercises wrapper padding + single-block path.
    B2 = 3000
    k4, k5, k6 = jax.random.split(jax.random.PRNGKey(1), 3)
    loc2 = jax.random.uniform(k4, (B2, 2), dtype=jnp.float32) * 3.0 - 1.0
    s2 = jax.random.uniform(k5, (B2,), dtype=jnp.float32)
    e2 = jax.random.uniform(k6, (B2,), dtype=jnp.float32)
    loss2 = jax.block_until_ready(boundary_regression_loss(loc2, s2, e2))
    ref2 = _reference(loc2, s2, e2)
    assert jnp.allclose(loss2, ref2, rtol=1e-5, atol=1e-6), (loss2, ref2)

    # Multi-block batch: exercises unmasked full tiles, the masked boundary
    # tile, and the 2-chunk "parallel" split used for v7x dual TensorCores.
    B3 = 200_000
    k7, k8, k9 = jax.random.split(jax.random.PRNGKey(2), 3)
    loc3 = jax.random.uniform(k7, (B3, 2), dtype=jnp.float32) * 3.0 - 1.0
    s3 = jax.random.uniform(k8, (B3,), dtype=jnp.float32)
    e3 = jax.random.uniform(k9, (B3,), dtype=jnp.float32)
    loss3 = jax.block_until_ready(boundary_regression_loss(loc3, s3, e3))
    ref3 = _reference(loc3, s3, e3)
    assert jnp.allclose(loss3, ref3, rtol=1e-4, atol=1e-6), (loss3, ref3)

    print("KERNEL_OK")
</pallas_src>

<mosaic_0001>
module attributes {stable_mosaic.version = 11 : i64} {
  func.func @_huber_sum_kernel(%arg0: i32, %arg1: i32, %arg2: memref<16x128xf32, #tpu.memory_space<vmem>>, %arg3: memref<16x128xf32, #tpu.memory_space<vmem>>, %arg4: memref<8x128xf32, #tpu.memory_space<vmem>>, %arg5: memref<8x128xf32, #tpu.memory_space<vmem>>) attributes {dimension_semantics = [#tpu.dimension_semantics<parallel>, #tpu.dimension_semantics<arbitrary>], iteration_bounds = array<i64: 1, 1>, scalar_prefetch = 0 : i64, scratch_operands = 1 : i64, tpu.core_type = #tpu.core_type<tc>, window_params = [{transform_indices = @transform_0, window_bounds = array<i64: 16, 128>}, {transform_indices = @transform_1, window_bounds = array<i64: 16, 128>}, {transform_indices = @transform_2, window_bounds = array<i64: 8, 128>}]} {
    %c0_i32 = arith.constant 0 : i32
    %0 = arith.cmpi eq, %arg1, %c0_i32 : i32
    %1 = arith.extui %0 : i1 to i32
    %c0_i32_0 = arith.constant 0 : i32
    %2 = arith.cmpi ne, %1, %c0_i32_0 : i32
    scf.if %2 {
      %cst = arith.constant 0.000000e+00 : f32
      %16 = vector.broadcast %cst : f32 to vector<8x128xf32>
      %c0 = arith.constant 0 : index
      %c0_8 = arith.constant 0 : index
      %17 = vector.load %arg5[%c0, %c0_8] : memref<8x128xf32, #tpu.memory_space<vmem>>, vector<8x128xf32>
      tpu.vector_store %arg5[%c0, %c0_8], %16 {strides = array<i32>} : memref<8x128xf32, #tpu.memory_space<vmem>>, vector<8x128xf32>,
    } else {
    }
    %c1_i32 = arith.constant 1 : i32
    %3 = arith.muli %arg0, %c1_i32 : i32
    %4 = arith.addi %3, %arg1 : i32
    %c1_i32_1 = arith.constant 1 : i32
    %5 = arith.cmpi slt, %4, %c1_i32_1 : i32
    %6 = arith.extui %5 : i1 to i32
    %c0_i32_2 = arith.constant 0 : i32
    %7 = arith.cmpi ne, %6, %c0_i32_2 : i32
    scf.if %7 {
      %c0 = arith.constant 0 : index
      %c0_8 = arith.constant 0 : index
      %16 = vector.load %arg2[%c0, %c0_8] : memref<16x128xf32, #tpu.memory_space<vmem>>, vector<16x128xf32>
      %c0_9 = arith.constant 0 : index
      %c0_10 = arith.constant 0 : index
      %17 = vector.load %arg3[%c0_9, %c0_10] : memref<16x128xf32, #tpu.memory_space<vmem>>, vector<16x128xf32>
      %18 = arith.subf %16, %17 : vector<16x128xf32>
      %19 = math.absf %18 : vector<16x128xf32>
      %cst = arith.constant 1.000000e+00 : f32
      %20 = vector.broadcast %cst : f32 to vector<16x128xf32>
      %21 = arith.cmpf olt, %19, %20 : vector<16x128xf32>
      %cst_11 = arith.constant 5.000000e-01 : f32
      %22 = vector.broadcast %cst_11 : f32 to vector<16x128xf32>
      %23 = arith.mulf %22, %18 : vector<16x128xf32>
      %24 = arith.mulf %23, %18 : vector<16x128xf32>
      %cst_12 = arith.constant 5.000000e-01 : f32
      %25 = vector.broadcast %cst_12 : f32 to vector<16x128xf32>
      %26 = arith.subf %19, %25 : vector<16x128xf32>
      %27 = arith.select %21, %24, %26 : vector<16x128xi1>, vector<16x128xf32>
      %c0_13 = arith.constant 0 : index
      %c0_14 = arith.constant 0 : index
      %28 = vector.load %arg5[%c0_13, %c0_14] : memref<8x128xf32, #tpu.memory_space<vmem>>, vector<8x128xf32>
      %29 = vector.shape_cast %27 : vector<16x128xf32> to vector<2x8x128xf32>
      %cst_15 = arith.constant dense<0.000000e+00> : vector<8x128xf32>
      %30 = vector.multi_reduction <add>, %29, %cst_15 [0] : vector<2x8x128xf32> to vector<8x128xf32>
      %31 = arith.addf %28, %30 : vector<8x128xf32>
      %c0_16 = arith.constant 0 : index
      %c0_17 = arith.constant 0 : index
      %32 = vector.load %arg5[%c0_16, %c0_17] : memref<8x128xf32, #tpu.memory_space<vmem>>, vector<8x128xf32>
      tpu.vector_store %arg5[%c0_16, %c0_17], %31 {strides = array<i32>} : memref<8x128xf32, #tpu.memory_space<vmem>>, vector<8x128xf32>,
    } else {
    }
    %c1_i32_3 = arith.constant 1 : i32
    %8 = arith.cmpi sge, %4, %c1_i32_3 : i32
    %c1_i32_4 = arith.constant 1 : i32
    %9 = arith.cmpi slt, %4, %c1_i32_4 : i32
    %10 = arith.andi %8, %9 : i1
    %11 = arith.extui %10 : i1 to i32
    %c0_i32_5 = arith.constant 0 : i32
    %12 = arith.cmpi ne, %11, %c0_i32_5 : i32
    scf.if %12 {
      %c0 = arith.constant 0 : index
      %c0_8 = arith.constant 0 : index
      %16 = vector.load %arg2[%c0, %c0_8] : memref<16x128xf32, #tpu.memory_space<vmem>>, vector<16x128xf32>
      %c0_9 = arith.constant 0 : index
      %c0_10 = arith.constant 0 : index
      %17 = vector.load %arg3[%c0_9, %c0_10] : memref<16x128xf32, #tpu.memory_space<vmem>>, vector<16x128xf32>
      %18 = arith.subf %16, %17 : vector<16x128xf32>
      %19 = math.absf %18 : vector<16x128xf32>
      %cst = arith.constant 1.000000e+00 : f32
      %20 = vector.broadcast %cst : f32 to vector<16x128xf32>
      %21 = arith.cmpf olt, %19, %20 : vector<16x128xf32>
      %cst_11 = arith.constant 5.000000e-01 : f32
      %22 = vector.broadcast %cst_11 : f32 to vector<16x128xf32>
      %23 = arith.mulf %22, %18 : vector<16x128xf32>
      %24 = arith.mulf %23, %18 : vector<16x128xf32>
      %cst_12 = arith.constant 5.000000e-01 : f32
      %25 = vector.broadcast %cst_12 : f32 to vector<16x128xf32>
      %26 = arith.subf %19, %25 : vector<16x128xf32>
      %27 = arith.select %21, %24, %26 : vector<16x128xi1>, vector<16x128xf32>
      %28 = tpu.iota {dimensions = array<i32: 0>} : vector<16x128xi32>
      %c16_i32 = arith.constant 16 : i32
      %29 = arith.muli %4, %c16_i32 : i32
      %30 = vector.broadcast %29 : i32 to vector<16x128xi32>
      %31 = arith.addi %28, %30 : vector<16x128xi32>
      %c16_i32_13 = arith.constant 16 : i32
      %32 = vector.broadcast %c16_i32_13 : i32 to vector<16x128xi32>
      %33 = arith.cmpi slt, %31, %32 : vector<16x128xi32>
      %cst_14 = arith.constant 0.000000e+00 : f32
      %34 = vector.broadcast %cst_14 : f32 to vector<16x128xf32>
      %35 = arith.select %33, %27, %34 : vector<16x128xi1>, vector<16x128xf32>
      %c0_15 = arith.constant 0 : index
      %c0_16 = arith.constant 0 : index
      %36 = vector.load %arg5[%c0_15, %c0_16] : memref<8x128xf32, #tpu.memory_space<vmem>>, vector<8x128xf32>
      %37 = vector.shape_cast %35 : vector<16x128xf32> to vector<2x8x128xf32>
      %cst_17 = arith.constant dense<0.000000e+00> : vector<8x128xf32>
      %38 = vector.multi_reduction <add>, %37, %cst_17 [0] : vector<2x8x128xf32> to vector<8x128xf32>
      %39 = arith.addf %36, %38 : vector<8x128xf32>
      %c0_18 = arith.constant 0 : index
      %c0_19 = arith.constant 0 : index
      %40 = vector.load %arg5[%c0_18, %c0_19] : memref<8x128xf32, #tpu.memory_space<vmem>>, vector<8x128xf32>
      tpu.vector_store %arg5[%c0_18, %c0_19], %39 {strides = array<i32>} : memref<8x128xf32, #tpu.memory_space<vmem>>, vector<8x128xf32>,
    } else {
    }
    %c0_i32_6 = arith.constant 0 : i32
    %13 = arith.cmpi eq, %arg1, %c0_i32_6 : i32
    %14 = arith.extui %13 : i1 to i32
    %c0_i32_7 = arith.constant 0 : i32
    %15 = arith.cmpi ne, %14, %c0_i32_7 : i32
    scf.if %15 {
      %c0 = arith.constant 0 : index
      %c0_8 = arith.constant 0 : index
      %16 = vector.load %arg5[%c0, %c0_8] : memref<8x128xf32, #tpu.memory_space<vmem>>, vector<8x128xf32>
      %c0_9 = arith.constant 0 : index
      %c0_10 = arith.constant 0 : index
      %17 = vector.load %arg4[%c0_9, %c0_10] : memref<8x128xf32, #tpu.memory_space<vmem>>, vector<8x128xf32>
      tpu.vector_store %arg4[%c0_9, %c0_10], %16 {strides = array<i32>} : memref<8x128xf32, #tpu.memory_space<vmem>>, vector<8x128xf32>,
    } else {
    }
    return
  }
  func.func @transform_0(%arg0: i32, %arg1: i32) -> (i32, i32) {
    %c1_i32 = arith.constant 1 : i32
    %0 = arith.muli %arg0, %c1_i32 : i32
    %1 = arith.addi %0, %arg1 : i32
    %c0_i32 = arith.constant 0 : i32
    %2 = arith.minsi %1, %c0_i32 : i32
    %c0_i32_0 = arith.constant 0 : i32
    %c0_i32_1 = arith.constant 0 : i32
    return %2, %c0_i32_0 : i32, i32
  }
  func.func @transform_1(%arg0: i32, %arg1: i32) -> (i32, i32) {
    %c1_i32 = arith.constant 1 : i32
    %0 = arith.muli %arg0, %c1_i32 : i32
    %1 = arith.addi %0, %arg1 : i32
    %c0_i32 = arith.constant 0 : i32
    %2 = arith.minsi %1, %c0_i32 : i32
    %c0_i32_0 = arith.constant 0 : i32
    %c0_i32_1 = arith.constant 0 : i32
    return %2, %c0_i32_0 : i32, i32
  }
  func.func @transform_2(%arg0: i32, %arg1: i32) -> (i32, i32) {
    %c0_i32 = arith.constant 0 : i32
    %c0_i32_0 = arith.constant 0 : i32
    return %arg0, %c0_i32 : i32, i32
  }
}

</mosaic_0001>

<llo_original>
// kernel: tpu_custom_call.1
$region0: #{tpu_custom_call.1}
  #allocation0 [shape = 'u32[]', space=smem, size = 0x4, offset = 0x4, fixed_abs, tag = 'smem constant byte address 0x4 - core index']
  #allocation1 [shape = 'u32[144,128]{1,0:T(1,128)}', space=vmem, size = 0x12000, scoped, tag = 'internal scratch']
  #allocation2 [shape = 'f32[8,128]{1,0:T(8,128)}', space=vmem, size = 0x1000, scoped, tag = 'scratch operand']
  %s0 = inlined_call_operand.hbm [shape: f32[16,128], index: 0, kind: input, shape index: {}]
  %s1 = inlined_call_operand.hbm [shape: f32[16,128], index: 1, kind: input, shape index: {}]
  %s2 = inlined_call_operand.hbm [shape: f32[8,128], index: 2, kind: output, shape index: {}]
  %s3 = sld [smem:[#allocation0]]
  $region42: #{tpu_custom_call.1} parent=0
    _
  %s5 = ssub.s32 1, %s3
  %s6 = scalar_select 0, %s5, %s3
  $region1: #{tpu_custom_call.1} parent=0
    #allocation3 [shape = 'u8[8192]{0}', space=vmem, size = 0x2000, scoped, tag = 'input window, operand 0, single buffered']
    #allocation4 [shape = 's32[1]{0}', space=sflag, size = 0x4, scoped, tag = 'scoped memory for tpu_custom_call.1']
    #allocation5 [shape = 's32[1]{0}', space=sflag, size = 0x4, scoped, tag = 'scoped memory for tpu_custom_call.1']
    #allocation6 [shape = 'u8[8192]{0}', space=vmem, size = 0x2000, scoped, tag = 'input window, operand 1, single buffered']
    #allocation7 [shape = 's32[1]{0}', space=sflag, size = 0x4, scoped, tag = 'scoped memory for tpu_custom_call.1']
    #allocation8 [shape = 'u8[4096]{0}', space=vmem, size = 0x1000, scoped, tag = 'output window, operand 0, single buffered']
    %7 = vsyncpa [#allocation4], 0
    %8 = vsyncpa [#allocation7], 0
    %9 = vsyncpa [#allocation5], 0
    // Predicated region
    $region2: #{tpu_custom_call.1} parent=1 // pred_check
      _
    $region3: #{tpu_custom_call.1} parent=1 // pred_check_branch
      %11 = sbr.rel (0) target = $region5
    $region4: #{tpu_custom_call.1} parent=1 // pred_region
      %s12 = sadd.s32 0, 0
      %p13 = scmp.lt.s32.totalorder %s12, 0
      %s14 = scalar_select %p13, %s12, 0
      %s15 = smul.u32 2, %s14
      %s17 = ssub.s32 256, 256
      %18 = vsyncadd [#allocation4], %s17
      %s19 = smul.addr %s15, 128
      %s20 = scalar_lea.hbm %s0, %s19
      %s21 = sshll.u32 [#allocation3], 4
      %s22 = int_to_ptr.vmem [resolvable:$true] %s21
      %27 = dma.hbm_to_vmem [thread:$0]  %s20, 256, %s22, [#allocation4], 128, 128, 8
    $region5: #{tpu_custom_call.1} parent=1 // pred_fallthru
      _
    // Predicated region
    $region6: #{tpu_custom_call.1} parent=1 // pred_check
      _
    $region7: #{tpu_custom_call.1} parent=1 // pred_check_branch
      %29 = sbr.rel (0) target = $region9
    $region8: #{tpu_custom_call.1} parent=1 // pred_region
      %s30 = sadd.s32 0, 0
      %p31 = scmp.lt.s32.totalorder %s30, 0
      %s32 = scalar_select %p31, %s30, 0
      %s33 = smul.u32 2, %s32
      %s35 = ssub.s32 256, 256
      %36 = vsyncadd [#allocation7], %s35
      %s37 = smul.addr %s33, 128
      %s38 = scalar_lea.hbm %s1, %s37
      %s39 = sshll.u32 [#allocation6], 4
      %s40 = int_to_ptr.vmem [resolvable:$true] %s39
      %45 = dma.hbm_to_vmem [thread:$0]  %s38, 256, %s40, [#allocation7], 128, 128, 8
    $region9: #{tpu_custom_call.1} parent=1 // pred_fallthru
      _
    // Predicated region
    $region10: #{tpu_custom_call.1} parent=1 // pred_check
      _
    $region11: #{tpu_custom_call.1} parent=1 // pred_check_branch
      %47 = sbr.rel (0) target = $region13
    $region12: #{tpu_custom_call.1} parent=1 // pred_region
      %48 = dma.done [#allocation4], 256
    $region13: #{tpu_custom_call.1} parent=1 // pred_fallthru
      _
    // Predicated region
    $region14: #{tpu_custom_call.1} parent=1 // pred_check
      _
    $region15: #{tpu_custom_call.1} parent=1 // pred_check_branch
      %50 = sbr.rel (0) target = $region17
    $region16: #{tpu_custom_call.1} parent=1 // pred_region
      %51 = dma.done [#allocation7], 256
    $region17: #{tpu_custom_call.1} parent=1 // pred_fallthru
      _
    %s52 = sadd.s32 0, 0
    %p53 = scmp.lt.s32.totalorder %s52, 0
    %s54 = scalar_select %p53, %s52, 0
    %s55 = smul.u32 2, %s54
    %s56 = sadd.s32 0, 0
    %p57 = scmp.lt.s32.totalorder %s56, 0
    %s58 = scalar_select %p57, %s56, 0
    %s59 = smul.u32 2, %s58
    %p60 = scmp.eq.s32.totalorder 0, 0
    // Predicated region
    $region18: #{tpu_custom_call.1} parent=1 // pred_check
      %p61 = pneg %p60
    $region19: #{tpu_custom_call.1} parent=1 // pred_check_branch
      %63 = sbr.rel (%p61) target = $region21
    $region20: #{tpu_custom_call.1} parent=1 // pred_region
      %64 = vst [vmem:[#allocation2] sm:$0xff] 0.0
    $region21: #{tpu_custom_call.1} parent=1 // pred_fallthru
      _
    %s65 = sadd.s32 0, 0
    %p66 = scmp.lt.s32.totalorder %s65, 1
    // Predicated region
    $region22: #{tpu_custom_call.1} parent=1 // pred_check
      %p67 = pneg %p66
    $region23: #{tpu_custom_call.1} parent=1 // pred_check_branch
      %69 = sbr.rel (%p67) target = $region25
    $region24: #{tpu_custom_call.1} parent=1 // pred_region
      %v70 = vld [vmem:[#allocation3] sm:$0xff]
      %v71 = vld [vmem:[#allocation3 + $0x8] sm:$0xff]
      %v72 = vld [vmem:[#allocation6] sm:$0xff]
      %v73 = vld [vmem:[#allocation6 + $0x8] sm:$0xff]
      %v74 = vsub.f32 %v70, %v72
      %v75 = vsub.f32 %v71, %v73
      %v76 = vand.u32 2147483647, %v74
      %v77 = vand.u32 2147483647, %v75
      %vm78 = vcmp.lt.f32.partialorder %v76, 1.0
      %vm79 = vcmp.lt.f32.partialorder %v77, 1.0
      %v80 = vmul.f32 %v74, 0.5
      %v81 = vmul.f32 %v75, 0.5
      %v82 = vmul.f32 %v80, %v74
      %v83 = vmul.f32 %v81, %v75
      %v84 = vsub.f32 %v76, 0.5
      %v85 = vsub.f32 %v77, 0.5
      %v86 = vsel %vm78, %v82, %v84
      %v87 = vsel %vm79, %v83, %v85
      %v88 = vld [vmem:[#allocation2] sm:$0xff]
      %v89 = vadd.f32 %v86, %v87
      %v90 = vadd.f32 %v88, %v89
      %91 = vst [vmem:[#allocation2] sm:$0xff] %v90
    $region25: #{tpu_custom_call.1} parent=1 // pred_fallthru
      _
    %p92 = scmp.ge.s32.totalorder %s65, 1
    %p93 = pnand %p92, %p66
    %p94 = pneg %p93
    // Predicated region
    $region26: #{tpu_custom_call.1} parent=1 // pred_check
      _
    $region27: #{tpu_custom_call.1} parent=1 // pred_check_branch
      %96 = sbr.rel (%p93) target = $region29
    $region28: #{tpu_custom_call.1} parent=1 // pred_region
      %v97 = vld [vmem:[#allocation3] sm:$0xff]
      %v98 = vld [vmem:[#allocation3 + $0x8] sm:$0xff]
      %v99 = vld [vmem:[#allocation6] sm:$0xff]
      %v100 = vld [vmem:[#allocation6 + $0x8] sm:$0xff]
      %v101 = vsub.f32 %v97, %v99
      %v102 = vsub.f32 %v98, %v100
      %v103 = vand.u32 2147483647, %v101
      %v104 = vand.u32 2147483647, %v102
      %vm105 = vcmp.lt.f32.partialorder %v103, 1.0
      %vm106 = vcmp.lt.f32.partialorder %v104, 1.0
      %v107 = vmul.f32 %v101, 0.5
      %v108 = vmul.f32 %v102, 0.5
      %v109 = vmul.f32 %v107, %v101
      %v110 = vmul.f32 %v108, %v102
      %v111 = vsub.f32 %v103, 0.5
      %v112 = vsub.f32 %v104, 0.5
      %v113 = vsel %vm105, %v109, %v111
      %v114 = vsel %vm106, %v110, %v112
      %v115 = vlaneseq
      %v116 = vshrl.u32 %v115, 7
      %v117 = vadd.s32 %v116, 8
      %s118 = smul.u32 %s65, 16
      %v119 = vstv %s118
      %v120 = vadd.s32 %v116, %v119
      %v121 = vadd.s32 %v117, %v119
      %vm122 = vcmp.lt.s32.totalorder %v120, 16
      %vm123 = vcmp.lt.s32.totalorder %v121, 16
      %v124 = vsel %vm122, %v113, 0.0
      %v125 = vsel %vm123, %v114, 0.0
      %v126 = vld [vmem:[#allocation2] sm:$0xff]
      %v127 = vadd.f32 %v124, %v125
      %v128 = vadd.f32 %v126, %v127
      %129 = vst [vmem:[#allocation2] sm:$0xff] %v128
    $region29: #{tpu_custom_call.1} parent=1 // pred_fallthru
      _
    // Predicated region
    $region30: #{tpu_custom_call.1} parent=1 // pred_check
      %p130 = pneg %p60
    $region31: #{tpu_custom_call.1} parent=1 // pred_check_branch
      %132 = sbr.rel (%p130) target = $region33
    $region32: #{tpu_custom_call.1} parent=1 // pred_region
      %v133 = vld [vmem:[#allocation2] sm:$0xff]
      %134 = vst [vmem:[#allocation8] sm:$0xff] %v133
    $region33: #{tpu_custom_call.1} parent=1 // pred_fallthru
      _
    // Predicated region
    $region34: #{tpu_custom_call.1} parent=1 // pred_check
      _
    $region35: #{tpu_custom_call.1} parent=1 // pred_check_branch
      %136 = sbr.rel (0) target = $region37
    $region36: #{tpu_custom_call.1} parent=1 // pred_region
      %s138 = ssub.s32 128, 128
      %139 = vsyncadd [#allocation5], %s138
      %s141 = sshll.u32 [#allocation8], 4
      %s142 = int_to_ptr.vmem [resolvable:$true] %s141
      %144 = dma.vmem_to_hbm [thread:$0]  %s142, 128, %s2, [#allocation5]
    $region37: #{tpu_custom_call.1} parent=1 // pred_fallthru
      _
    // Predicated region
    $region38: #{tpu_custom_call.1} parent=1 // pred_check
      _
    $region39: #{tpu_custom_call.1} parent=1 // pred_check_branch
      %146 = sbr.rel (0) target = $region41
    $region40: #{tpu_custom_call.1} parent=1 // pred_region
      %147 = dma.done [#allocation5], 128
    $region41: #{tpu_custom_call.1} parent=1 // pred_fallthru
      _
    %148 = vsyncpa [#allocation4], 1
    %149 = vsyncpa [#allocation7], 1
    %150 = vsyncpa [#allocation5], 1

</llo_original>
